<compile_context>
chip_gen: v7x
topology: tpu7x:2x2x1
jax: 0.10.0
libtpu: 0.0.40
codegen_flags: <defaults>
</compile_context>

<pallas_src>
import jax
import jax.numpy as jnp
from jax.experimental import pallas as pl
from jax.experimental.pallas import tpu as pltpu

P_DROP = 0.1


def dropout_conv1x1_kernel(x_ref, u_ref, w_ref, b_ref, o_ref):
    # x_ref: VMEM (Cin, P)  f32   input in channels-major layout
    # u_ref: VMEM (Cin, P)  f32   uniform[0,1) dropout draws
    # w_ref: VMEM (Cout, Cin) f32 weight, pre-scaled by 1/(1-p)
    # b_ref: VMEM (Cout, 1) f32   bias
    # o_ref: VMEM (Cout, P) f32
    keep = u_ref[...] >= jnp.float32(P_DROP)          # drop with prob p
    x_drop = jnp.where(keep, x_ref[...], jnp.float32(0.0))
    o_ref[...] = (
        jnp.dot(w_ref[...], x_drop, preferred_element_type=jnp.float32)
        + b_ref[...]
    )


def conv1x1_kernel(x_ref, w_ref, b_ref, o_ref):
    # Eval-mode path (Dropout is identity in eval()).
    o_ref[...] = (
        jnp.dot(w_ref[...], x_ref[...], preferred_element_type=jnp.float32)
        + b_ref[...]
    )


def dropout_conv1x1(x_nchw, weight, bias, key, training=True):
    """x_nchw: (1, Cin, H, W); weight: (Cout, Cin, 1, 1); bias: (Cout,)."""
    N, Cin, H, W = x_nchw.shape
    assert N == 1, "channels-major zero-copy layout assumes batch size 1"
    Cout = weight.shape[0]
    P = H * W

    # NCHW with N=1 -> (Cin, P): pure reshape, no transpose / no data movement.
    x_cp = x_nchw.reshape(Cin, P).astype(jnp.float32)
    b_2d = bias.reshape(Cout, 1).astype(jnp.float32)

    vmem = pltpu.MemorySpace.VMEM

    if training:
        # Fold the survivor scale 1/(1-p) into the (tiny) weight, once.
        w_eff = (weight.reshape(Cout, Cin) * (1.0 / (1.0 - P_DROP))).astype(
            jnp.float32
        )
        u = jax.random.uniform(key, (Cin, P), dtype=jnp.float32)
        out_cp = pl.pallas_call(
            dropout_conv1x1_kernel,
            out_shape=jax.ShapeDtypeStruct((Cout, P), jnp.float32),
            in_specs=[
                pl.BlockSpec(memory_space=vmem),  # x  (Cin, P)
                pl.BlockSpec(memory_space=vmem),  # u  (Cin, P)
                pl.BlockSpec(memory_space=vmem),  # w  (Cout, Cin)
                pl.BlockSpec(memory_space=vmem),  # b  (Cout, 1)
            ],
            out_specs=pl.BlockSpec(memory_space=vmem),
        )(x_cp, u, w_eff, b_2d)
    else:
        w_eff = weight.reshape(Cout, Cin).astype(jnp.float32)
        out_cp = pl.pallas_call(
            conv1x1_kernel,
            out_shape=jax.ShapeDtypeStruct((Cout, P), jnp.float32),
            in_specs=[
                pl.BlockSpec(memory_space=vmem),  # x
                pl.BlockSpec(memory_space=vmem),  # w
                pl.BlockSpec(memory_space=vmem),  # b
            ],
            out_specs=pl.BlockSpec(memory_space=vmem),
        )(x_cp, w_eff, b_2d)

    # (Cout, P) -> (1, Cout, H, W): pure reshape again.
    return out_cp.reshape(N, Cout, H, W)


if __name__ == "__main__":
    key = jax.random.PRNGKey(0)
    k_x, k_w, k_b, k_drop = jax.random.split(key, 4)

    # Shapes implied by the module's forward: x353 = (1, 256, 28, 28)
    N, Cin, H, W, Cout = 1, 256, 28, 28, 21

    x = jax.random.normal(k_x, (N, Cin, H, W), dtype=jnp.float32)

    # Conv2d(256, 21, 1) parameter shapes: weight (21, 256, 1, 1), bias (21,)
    fan_in = Cin * 1 * 1
    bound = 1.0 / (fan_in ** 0.5)
    weight = jax.random.uniform(
        k_w, (Cout, Cin, 1, 1), dtype=jnp.float32, minval=-bound, maxval=bound
    )
    bias = jax.random.uniform(
        k_b, (Cout,), dtype=jnp.float32, minval=-bound, maxval=bound
    )

    out = dropout_conv1x1(x, weight, bias, k_drop, training=True)
    out = jax.block_until_ready(out)

    assert out.shape == (N, Cout, H, W), out.shape
    assert out.dtype == jnp.float32, out.dtype
    assert bool(jnp.all(jnp.isfinite(out)))

    # Also exercise the eval-mode (identity dropout) path once.
    out_eval = jax.block_until_ready(
        dropout_conv1x1(x, weight, bias, k_drop, training=False)
    )
    assert out_eval.shape == (N, Cout, H, W)

    print("KERNEL_OK")
</pallas_src>

<mosaic_0001>
module attributes {stable_mosaic.version = 11 : i64} {
  func.func @dropout_conv1x1_kernel(%arg0: memref<256x784xf32, #tpu.memory_space<vmem>>, %arg1: memref<256x784xf32, #tpu.memory_space<vmem>>, %arg2: memref<21x256xf32, #tpu.memory_space<vmem>>, %arg3: memref<21x1xf32, #tpu.memory_space<vmem>>, %arg4: memref<21x784xf32, #tpu.memory_space<vmem>>) attributes {dimension_semantics = [], scalar_prefetch = 0 : i64, scratch_operands = 0 : i64, tpu.core_type = #tpu.core_type<tc>} {
    %c0 = arith.constant 0 : index
    %c0_0 = arith.constant 0 : index
    %0 = vector.load %arg1[%c0, %c0_0] : memref<256x784xf32, #tpu.memory_space<vmem>>, vector<256x784xf32>
    %cst = arith.constant 1.000000e-01 : f32
    %1 = vector.broadcast %cst : f32 to vector<256x784xf32>
    %2 = arith.cmpf oge, %0, %1 : vector<256x784xf32>
    %c0_1 = arith.constant 0 : index
    %c0_2 = arith.constant 0 : index
    %3 = vector.load %arg0[%c0_1, %c0_2] : memref<256x784xf32, #tpu.memory_space<vmem>>, vector<256x784xf32>
    %cst_3 = arith.constant 0.000000e+00 : f32
    %4 = vector.broadcast %cst_3 : f32 to vector<256x784xf32>
    %5 = arith.select %2, %3, %4 : vector<256x784xi1>, vector<256x784xf32>
    %c0_4 = arith.constant 0 : index
    %c0_5 = arith.constant 0 : index
    %6 = vector.load %arg2[%c0_4, %c0_5] : memref<21x256xf32, #tpu.memory_space<vmem>>, vector<21x256xf32>
    %cst_6 = arith.constant dense<0.000000e+00> : vector<21x784xf32>
    %7 = tpu.matmul %6, %5, %cst_6 {dimension_numbers = #tpu.dot_dimension_numbers<[1], [0], [0], [1], [0, 0, 1, 1], [], []>} : vector<21x256xf32>, vector<256x784xf32>, vector<21x784xf32> -> vector<21x784xf32>
    %c0_7 = arith.constant 0 : index
    %c0_8 = arith.constant 0 : index
    %8 = vector.load %arg3[%c0_7, %c0_8] : memref<21x1xf32, #tpu.memory_space<vmem>>, vector<21x1xf32>
    %9 = vector.broadcast %8 : vector<21x1xf32> to vector<21x784xf32>
    %10 = arith.addf %7, %9 : vector<21x784xf32>
    %c0_9 = arith.constant 0 : index
    %c0_10 = arith.constant 0 : index
    %11 = vector.load %arg4[%c0_9, %c0_10] : memref<21x784xf32, #tpu.memory_space<vmem>>, vector<21x784xf32>
    tpu.vector_store %arg4[%c0_9, %c0_10], %10 {strides = array<i32>} : memref<21x784xf32, #tpu.memory_space<vmem>>, vector<21x784xf32>,
    return
  }
}

</mosaic_0001>

<llo_original>
// kernel: tpu_custom_call.1
$region0: #{tpu_custom_call.1}
  #allocation0 [shape = 'u32[]', space=smem, size = 0x4, offset = 0x4, fixed_abs, tag = 'smem constant byte address 0x4 - core index']
  #allocation1 [shape = 'u32[144,128]{1,0:T(1,128)}', space=vmem, size = 0x12000, scoped, tag = 'internal scratch']
  %s0 = inlined_call_operand.vmem [shape: f32[256,784], index: 0, kind: input, shape index: {}]
  %s1 = inlined_call_operand.vmem [shape: f32[256,784], index: 1, kind: input, shape index: {}]
  %s2 = inlined_call_operand.vmem [shape: f32[21,256], index: 2, kind: input, shape index: {}]
  %s3 = inlined_call_operand.vmem [shape: f32[21,1], index: 3, kind: input, shape index: {}]
  %s4 = inlined_call_operand.hbm [shape: f32[21,784], index: 4, kind: output, shape index: {}]
  %s5 = sld [smem:[#allocation0]]
  $region26: #{tpu_custom_call.1} parent=0
    _
  %s7 = ssub.s32 1, %s5
  %s8 = scalar_select 0, %s7, %s5
  $region1: #{tpu_custom_call.1} parent=0
    #allocation2 [shape = 'u8[86016]{0}', space=vmem, size = 0x15000, scoped, tag = 'output window, operand 0, single buffered']
    #allocation3 [shape = 's32[1]{0}', space=sflag, size = 0x4, scoped, tag = 'scoped memory for tpu_custom_call.1']
    %9 = vsyncpa [#allocation3], 0
    // Predicated region
    $region2: #{tpu_custom_call.1} parent=1 // pred_check
      _
    $region3: #{tpu_custom_call.1} parent=1 // pred_check_branch
      %11 = sbr.rel (0) target = $region5
    $region4: #{tpu_custom_call.1} parent=1 // pred_region
      _
    $region5: #{tpu_custom_call.1} parent=1 // pred_fallthru
      _
    // Predicated region
    $region6: #{tpu_custom_call.1} parent=1 // pred_check
      _
    $region7: #{tpu_custom_call.1} parent=1 // pred_check_branch
      %13 = sbr.rel (0) target = $region9
    $region8: #{tpu_custom_call.1} parent=1 // pred_region
      _
    $region9: #{tpu_custom_call.1} parent=1 // pred_fallthru
      _
    // Predicated region
    $region10: #{tpu_custom_call.1} parent=1 // pred_check
      _
    $region11: #{tpu_custom_call.1} parent=1 // pred_check_branch
      %15 = sbr.rel (0) target = $region13
    $region12: #{tpu_custom_call.1} parent=1 // pred_region
      _
    $region13: #{tpu_custom_call.1} parent=1 // pred_fallthru
      _
    // Predicated region
    $region14: #{tpu_custom_call.1} parent=1 // pred_check
      _
    $region15: #{tpu_custom_call.1} parent=1 // pred_check_branch
      %17 = sbr.rel (0) target = $region17
    $region16: #{tpu_custom_call.1} parent=1 // pred_region
      _
    $region17: #{tpu_custom_call.1} parent=1 // pred_fallthru
      _
    %v18 = vld [vmem:[%s1] sm:$0xff]
    %v19 = vld [vmem:[%s1 + $0x8] sm:$0xff]
    %v20 = vld [vmem:[%s1 + $0x10] sm:$0xff]
    %v21 = vld [vmem:[%s1 + $0x18] sm:$0xff]
    %v22 = vld [vmem:[%s1 + $0x20] sm:$0xff]
    %v23 = vld [vmem:[%s1 + $0x28] sm:$0xff]
    %v24 = vld [vmem:[%s1 + $0x30] sm:$0xff]
    %v25 = vld [vmem:[%s1 + $0x38] sm:$0xff]
    %v26 = vld [vmem:[%s1 + $0x40] sm:$0xff]
    %v27 = vld [vmem:[%s1 + $0x48] sm:$0xff]
    %v28 = vld [vmem:[%s1 + $0x50] sm:$0xff]
    %v29 = vld [vmem:[%s1 + $0x58] sm:$0xff]
    %v30 = vld [vmem:[%s1 + $0x60] sm:$0xff]
    %v31 = vld [vmem:[%s1 + $0x68] sm:$0xff]
    %v32 = vld [vmem:[%s1 + $0x70] sm:$0xff]
    %v33 = vld [vmem:[%s1 + $0x78] sm:$0xff]
    %v34 = vld [vmem:[%s1 + $0x80] sm:$0xff]
    %v35 = vld [vmem:[%s1 + $0x88] sm:$0xff]
    %v36 = vld [vmem:[%s1 + $0x90] sm:$0xff]
    %v37 = vld [vmem:[%s1 + $0x98] sm:$0xff]
    %v38 = vld [vmem:[%s1 + $0xa0] sm:$0xff]
    %v39 = vld [vmem:[%s1 + $0xa8] sm:$0xff]
    %v40 = vld [vmem:[%s1 + $0xb0] sm:$0xff]
    %v41 = vld [vmem:[%s1 + $0xb8] sm:$0xff]
    %v42 = vld [vmem:[%s1 + $0xc0] sm:$0xff]
    %v43 = vld [vmem:[%s1 + $0xc8] sm:$0xff]
    %v44 = vld [vmem:[%s1 + $0xd0] sm:$0xff]
    %v45 = vld [vmem:[%s1 + $0xd8] sm:$0xff]
    %v46 = vld [vmem:[%s1 + $0xe0] sm:$0xff]
    %v47 = vld [vmem:[%s1 + $0xe8] sm:$0xff]
    %v48 = vld [vmem:[%s1 + $0xf0] sm:$0xff]
    %v49 = vld [vmem:[%s1 + $0xf8] sm:$0xff]
    %v50 = vld [vmem:[%s1 + $0x100] sm:$0xff]
    %v51 = vld [vmem:[%s1 + $0x108] sm:$0xff]
    %v52 = vld [vmem:[%s1 + $0x110] sm:$0xff]
    %v53 = vld [vmem:[%s1 + $0x118] sm:$0xff]
    %v54 = vld [vmem:[%s1 + $0x120] sm:$0xff]
    %v55 = vld [vmem:[%s1 + $0x128] sm:$0xff]
    %v56 = vld [vmem:[%s1 + $0x130] sm:$0xff]
    %v57 = vld [vmem:[%s1 + $0x138] sm:$0xff]
    %v58 = vld [vmem:[%s1 + $0x140] sm:$0xff]
    %v59 = vld [vmem:[%s1 + $0x148] sm:$0xff]
    %v60 = vld [vmem:[%s1 + $0x150] sm:$0xff]
    %v61 = vld [vmem:[%s1 + $0x158] sm:$0xff]
    %v62 = vld [vmem:[%s1 + $0x160] sm:$0xff]
    %v63 = vld [vmem:[%s1 + $0x168] sm:$0xff]
    %v64 = vld [vmem:[%s1 + $0x170] sm:$0xff]
    %v65 = vld [vmem:[%s1 + $0x178] sm:$0xff]
    %v66 = vld [vmem:[%s1 + $0x180] sm:$0xff]
    %v67 = vld [vmem:[%s1 + $0x188] sm:$0xff]
    %v68 = vld [vmem:[%s1 + $0x190] sm:$0xff]
    %v69 = vld [vmem:[%s1 + $0x198] sm:$0xff]
    %v70 = vld [vmem:[%s1 + $0x1a0] sm:$0xff]
    %v71 = vld [vmem:[%s1 + $0x1a8] sm:$0xff]
    %v72 = vld [vmem:[%s1 + $0x1b0] sm:$0xff]
    %v73 = vld [vmem:[%s1 + $0x1b8] sm:$0xff]
    %v74 = vld [vmem:[%s1 + $0x1c0] sm:$0xff]
    %v75 = vld [vmem:[%s1 + $0x1c8] sm:$0xff]
    %v76 = vld [vmem:[%s1 + $0x1d0] sm:$0xff]
    %v77 = vld [vmem:[%s1 + $0x1d8] sm:$0xff]
    %v78 = vld [vmem:[%s1 + $0x1e0] sm:$0xff]
    %v79 = vld [vmem:[%s1 + $0x1e8] sm:$0xff]
    %v80 = vld [vmem:[%s1 + $0x1f0] sm:$0xff]
    %v81 = vld [vmem:[%s1 + $0x1f8] sm:$0xff]
    %v82 = vld [vmem:[%s1 + $0x200] sm:$0xff]
    %v83 = vld [vmem:[%s1 + $0x208] sm:$0xff]
    %v84 = vld [vmem:[%s1 + $0x210] sm:$0xff]
    %v85 = vld [vmem:[%s1 + $0x218] sm:$0xff]
    %v86 = vld [vmem:[%s1 + $0x220] sm:$0xff]
    %v87 = vld [vmem:[%s1 + $0x228] sm:$0xff]
    %v88 = vld [vmem:[%s1 + $0x230] sm:$0xff]
    %v89 = vld [vmem:[%s1 + $0x238] sm:$0xff]
    %v90 = vld [vmem:[%s1 + $0x240] sm:$0xff]
    %v91 = vld [vmem:[%s1 + $0x248] sm:$0xff]
    %v92 = vld [vmem:[%s1 + $0x250] sm:$0xff]
    %v93 = vld [vmem:[%s1 + $0x258] sm:$0xff]
    %v94 = vld [vmem:[%s1 + $0x260] sm:$0xff]
    %v95 = vld [vmem:[%s1 + $0x268] sm:$0xff]
    %v96 = vld [vmem:[%s1 + $0x270] sm:$0xff]
    %v97 = vld [vmem:[%s1 + $0x278] sm:$0xff]
    %v98 = vld [vmem:[%s1 + $0x280] sm:$0xff]
    %v99 = vld [vmem:[%s1 + $0x288] sm:$0xff]
    %v100 = vld [vmem:[%s1 + $0x290] sm:$0xff]
    %v101 = vld [vmem:[%s1 + $0x298] sm:$0xff]
    %v102 = vld [vmem:[%s1 + $0x2a0] sm:$0xff]
    %v103 = vld [vmem:[%s1 + $0x2a8] sm:$0xff]
    %v104 = vld [vmem:[%s1 + $0x2b0] sm:$0xff]
    %v105 = vld [vmem:[%s1 + $0x2b8] sm:$0xff]
    %v106 = vld [vmem:[%s1 + $0x2c0] sm:$0xff]
    %v107 = vld [vmem:[%s1 + $0x2c8] sm:$0xff]
    %v108 = vld [vmem:[%s1 + $0x2d0] sm:$0xff]
    %v109 = vld [vmem:[%s1 + $0x2d8] sm:$0xff]
    %v110 = vld [vmem:[%s1 + $0x2e0] sm:$0xff]
    %v111 = vld [vmem:[%s1 + $0x2e8] sm:$0xff]
    %v112 = vld [vmem:[%s1 + $0x2f0] sm:$0xff]
    %v113 = vld [vmem:[%s1 + $0x2f8] sm:$0xff]
    %v114 = vld [vmem:[%s1 + $0x300] sm:$0xff]
    %v115 = vld [vmem:[%s1 + $0x308] sm:$0xff]
    %v116 = vld [vmem:[%s1 + $0x310] sm:$0xff]
    %v117 = vld [vmem:[%s1 + $0x318] sm:$0xff]
    %v118 = vld [vmem:[%s1 + $0x320] sm:$0xff]
    %v119 = vld [vmem:[%s1 + $0x328] sm:$0xff]
    %v120 = vld [vmem:[%s1 + $0x330] sm:$0xff]
    %v121 = vld [vmem:[%s1 + $0x338] sm:$0xff]
    %v122 = vld [vmem:[%s1 + $0x340] sm:$0xff]
    %v123 = vld [vmem:[%s1 + $0x348] sm:$0xff]
    %v124 = vld [vmem:[%s1 + $0x350] sm:$0xff]
    %v125 = vld [vmem:[%s1 + $0x358] sm:$0xff]
    %v126 = vld [vmem:[%s1 + $0x360] sm:$0xff]
    %v127 = vld [vmem:[%s1 + $0x368] sm:$0xff]
    %v128 = vld [vmem:[%s1 + $0x370] sm:$0xff]
    %v129 = vld [vmem:[%s1 + $0x378] sm:$0xff]
    %v130 = vld [vmem:[%s1 + $0x380] sm:$0xff]
    %v131 = vld [vmem:[%s1 + $0x388] sm:$0xff]
    %v132 = vld [vmem:[%s1 + $0x390] sm:$0xff]
    %v133 = vld [vmem:[%s1 + $0x398] sm:$0xff]
    %v134 = vld [vmem:[%s1 + $0x3a0] sm:$0xff]
    %v135 = vld [vmem:[%s1 + $0x3a8] sm:$0xff]
    %v136 = vld [vmem:[%s1 + $0x3b0] sm:$0xff]
    %v137 = vld [vmem:[%s1 + $0x3b8] sm:$0xff]
    %v138 = vld [vmem:[%s1 + $0x3c0] sm:$0xff]
    %v139 = vld [vmem:[%s1 + $0x3c8] sm:$0xff]
    %v140 = vld [vmem:[%s1 + $0x3d0] sm:$0xff]
    %v141 = vld [vmem:[%s1 + $0x3d8] sm:$0xff]
    %v142 = vld [vmem:[%s1 + $0x3e0] sm:$0xff]
    %v143 = vld [vmem:[%s1 + $0x3e8] sm:$0xff]
    %v144 = vld [vmem:[%s1 + $0x3f0] sm:$0xff]
    %v145 = vld [vmem:[%s1 + $0x3f8] sm:$0xff]
    %v146 = vld [vmem:[%s1 + $0x400] sm:$0xff]
    %v147 = vld [vmem:[%s1 + $0x408] sm:$0xff]
    %v148 = vld [vmem:[%s1 + $0x410] sm:$0xff]
    %v149 = vld [vmem:[%s1 + $0x418] sm:$0xff]
    %v150 = vld [vmem:[%s1 + $0x420] sm:$0xff]
    %v151 = vld [vmem:[%s1 + $0x428] sm:$0xff]
    %v152 = vld [vmem:[%s1 + $0x430] sm:$0xff]
    %v153 = vld [vmem:[%s1 + $0x438] sm:$0xff]
    %v154 = vld [vmem:[%s1 + $0x440] sm:$0xff]
    %v155 = vld [vmem:[%s1 + $0x448] sm:$0xff]
    %v156 = vld [vmem:[%s1 + $0x450] sm:$0xff]
    %v157 = vld [vmem:[%s1 + $0x458] sm:$0xff]
    %v158 = vld [vmem:[%s1 + $0x460] sm:$0xff]
    %v159 = vld [vmem:[%s1 + $0x468] sm:$0xff]
    %v160 = vld [vmem:[%s1 + $0x470] sm:$0xff]
    %v161 = vld [vmem:[%s1 + $0x478] sm:$0xff]
    %v162 = vld [vmem:[%s1 + $0x480] sm:$0xff]
    %v163 = vld [vmem:[%s1 + $0x488] sm:$0xff]
    %v164 = vld [vmem:[%s1 + $0x490] sm:$0xff]
    %v165 = vld [vmem:[%s1 + $0x498] sm:$0xff]
    %v166 = vld [vmem:[%s1 + $0x4a0] sm:$0xff]
    %v167 = vld [vmem:[%s1 + $0x4a8] sm:$0xff]
    %v168 = vld [vmem:[%s1 + $0x4b0] sm:$0xff]
    %v169 = vld [vmem:[%s1 + $0x4b8] sm:$0xff]
    %v170 = vld [vmem:[%s1 + $0x4c0] sm:$0xff]
    %v171 = vld [vmem:[%s1 + $0x4c8] sm:$0xff]
    %v172 = vld [vmem:[%s1 + $0x4d0] sm:$0xff]
    %v173 = vld [vmem:[%s1 + $0x4d8] sm:$0xff]
    %v174 = vld [vmem:[%s1 + $0x4e0] sm:$0xff]
    %v175 = vld [vmem:[%s1 + $0x4e8] sm:$0xff]
    %v176 = vld [vmem:[%s1 + $0x4f0] sm:$0xff]
    %v177 = vld [vmem:[%s1 + $0x4f8] sm:$0xff]
    %v178 = vld [vmem:[%s1 + $0x500] sm:$0xff]
    %v179 = vld [vmem:[%s1 + $0x508] sm:$0xff]
    %v180 = vld [vmem:[%s1 + $0x510] sm:$0xff]
    %v181 = vld [vmem:[%s1 + $0x518] sm:$0xff]
    %v182 = vld [vmem:[%s1 + $0x520] sm:$0xff]
    %v183 = vld [vmem:[%s1 + $0x528] sm:$0xff]
    %v184 = vld [vmem:[%s1 + $0x530] sm:$0xff]
    %v185 = vld [vmem:[%s1 + $0x538] sm:$0xff]
    %v186 = vld [vmem:[%s1 + $0x540] sm:$0xff]
    %v187 = vld [vmem:[%s1 + $0x548] sm:$0xff]
    %v188 = vld [vmem:[%s1 + $0x550] sm:$0xff]
    %v189 = vld [vmem:[%s1 + $0x558] sm:$0xff]
    %v190 = vld [vmem:[%s1 + $0x560] sm:$0xff]
    %v191 = vld [vmem:[%s1 + $0x568] sm:$0xff]
    %v192 = vld [vmem:[%s1 + $0x570] sm:$0xff]
    %v193 = vld [vmem:[%s1 + $0x578] sm:$0xff]
    %v194 = vld [vmem:[%s1 + $0x580] sm:$0xff]
    %v195 = vld [vmem:[%s1 + $0x588] sm:$0xff]
    %v196 = vld [vmem:[%s1 + $0x590] sm:$0xff]
    %v197 = vld [vmem:[%s1 + $0x598] sm:$0xff]
    %v198 = vld [vmem:[%s1 + $0x5a0] sm:$0xff]
    %v199 = vld [vmem:[%s1 + $0x5a8] sm:$0xff]
    %v200 = vld [vmem:[%s1 + $0x5b0] sm:$0xff]
    %v201 = vld [vmem:[%s1 + $0x5b8] sm:$0xff]
    %v202 = vld [vmem:[%s1 + $0x5c0] sm:$0xff]
    %v203 = vld [vmem:[%s1 + $0x5c8] sm:$0xff]
    %v204 = vld [vmem:[%s1 + $0x5d0] sm:$0xff]
    %v205 = vld [vmem:[%s1 + $0x5d8] sm:$0xff]
    %v206 = vld [vmem:[%s1 + $0x5e0] sm:$0xff]
    %v207 = vld [vmem:[%s1 + $0x5e8] sm:$0xff]
    %v208 = vld [vmem:[%s1 + $0x5f0] sm:$0xff]
    %v209 = vld [vmem:[%s1 + $0x5f8] sm:$0xff]
    %v210 = vld [vmem:[%s1 + $0x600] sm:$0xff]
    %v211 = vld [vmem:[%s1 + $0x608] sm:$0xff]
    %v212 = vld [vmem:[%s1 + $0x610] sm:$0xff]
    %v213 = vld [vmem:[%s1 + $0x618] sm:$0xff]
    %v214 = vld [vmem:[%s1 + $0x620] sm:$0xff]
    %v215 = vld [vmem:[%s1 + $0x628] sm:$0xff]
    %v216 = vld [vmem:[%s1 + $0x630] sm:$0xff]
    %v217 = vld [vmem:[%s1 + $0x638] sm:$0xff]
    %v218 = vld [vmem:[%s1 + $0x640] sm:$0xff]
    %v219 = vld [vmem:[%s1 + $0x648] sm:$0xff]
    %v220 = vld [vmem:[%s1 + $0x650] sm:$0xff]
    %v221 = vld [vmem:[%s1 + $0x658] sm:$0xff]
    %v222 = vld [vmem:[%s1 + $0x660] sm:$0xff]
    %v223 = vld [vmem:[%s1 + $0x668] sm:$0xff]
    %v224 = vld [vmem:[%s1 + $0x670] sm:$0xff]
    %v225 = vld [vmem:[%s1 + $0x678] sm:$0xff]
    %v226 = vld [vmem:[%s1 + $0x680] sm:$0xff]
    %v227 = vld [vmem:[%s1 + $0x688] sm:$0xff]
    %v228 = vld [vmem:[%s1 + $0x690] sm:$0xff]
    %v229 = vld [vmem:[%s1 + $0x698] sm:$0xff]
    %v230 = vld [vmem:[%s1 + $0x6a0] sm:$0xff]
    %v231 = vld [vmem:[%s1 + $0x6a8] sm:$0xff]
    %v232 = vld [vmem:[%s1 + $0x6b0] sm:$0xff]
    %v233 = vld [vmem:[%s1 + $0x6b8] sm:$0xff]
    %v234 = vld [vmem:[%s1 + $0x6c0] sm:$0xff]
    %v235 = vld [vmem:[%s1 + $0x6c8] sm:$0xff]
    %v236 = vld [vmem:[%s1 + $0x6d0] sm:$0xff]
    %v237 = vld [vmem:[%s1 + $0x6d8] sm:$0xff]
    %v238 = vld [vmem:[%s1 + $0x6e0] sm:$0xff]
    %v239 = vld [vmem:[%s1 + $0x6e8] sm:$0xff]
    %v240 = vld [vmem:[%s1 + $0x6f0] sm:$0xff]
    %v241 = vld [vmem:[%s1 + $0x6f8] sm:$0xff]
    %vm242 = vcmp.ge.f32.partialorder %v18, 0.1
    %vm243 = vcmp.ge.f32.partialorder %v19, 0.1
    %vm244 = vcmp.ge.f32.partialorder %v20, 0.1
    %vm245 = vcmp.ge.f32.partialorder %v21, 0.1
    %vm246 = vcmp.ge.f32.partialorder %v22, 0.1
    %vm247 = vcmp.ge.f32.partialorder %v23, 0.1
    %vm248 = vcmp.ge.f32.partialorder %v24, 0.1
    %vm249 = vcmp.ge.f32.partialorder %v25, 0.1
    %vm250 = vcmp.ge.f32.partialorder %v26, 0.1
    %vm251 = vcmp.ge.f32.partialorder %v27, 0.1
    %vm252 = vcmp.ge.f32.partialorder %v28, 0.1
    %vm253 = vcmp.ge.f32.partialorder %v29, 0.1
    %vm254 = vcmp.ge.f32.partialorder %v30, 0.1
    %vm255 = vcmp.ge.f32.partialorder %v31, 0.1
    %vm256 = vcmp.ge.f32.partialorder %v32, 0.1
    %vm257 = vcmp.ge.f32.partialorder %v33, 0.1
    %vm258 = vcmp.ge.f32.partialorder %v34, 0.1
    %vm259 = vcmp.ge.f32.partialorder %v35, 0.1
    %vm260 = vcmp.ge.f32.partialorder %v36, 0.1
    %vm261 = vcmp.ge.f32.partialorder %v37, 0.1
    %vm262 = vcmp.ge.f32.partialorder %v38, 0.1
    %vm263 = vcmp.ge.f32.partialorder %v39, 0.1
    %vm264 = vcmp.ge.f32.partialorder %v40, 0.1
    %vm265 = vcmp.ge.f32.partialorder %v41, 0.1
    %vm266 = vcmp.ge.f32.partialorder %v42, 0.1
    %vm267 = vcmp.ge.f32.partialorder %v43, 0.1
    %vm268 = vcmp.ge.f32.partialorder %v44, 0.1
    %vm269 = vcmp.ge.f32.partialorder %v45, 0.1
    %vm270 = vcmp.ge.f32.partialorder %v46, 0.1
    %vm271 = vcmp.ge.f32.partialorder %v47, 0.1
    %vm272 = vcmp.ge.f32.partialorder %v48, 0.1
    %vm273 = vcmp.ge.f32.partialorder %v49, 0.1
    %vm274 = vcmp.ge.f32.partialorder %v50, 0.1
    %vm275 = vcmp.ge.f32.partialorder %v51, 0.1
    %vm276 = vcmp.ge.f32.partialorder %v52, 0.1
    %vm277 = vcmp.ge.f32.partialorder %v53, 0.1
    %vm278 = vcmp.ge.f32.partialorder %v54, 0.1
    %vm279 = vcmp.ge.f32.partialorder %v55, 0.1
    %vm280 = vcmp.ge.f32.partialorder %v56, 0.1
    %vm281 = vcmp.ge.f32.partialorder %v57, 0.1
    %vm282 = vcmp.ge.f32.partialorder %v58, 0.1
    %vm283 = vcmp.ge.f32.partialorder %v59, 0.1
    %vm284 = vcmp.ge.f32.partialorder %v60, 0.1
    %vm285 = vcmp.ge.f32.partialorder %v61, 0.1
    %vm286 = vcmp.ge.f32.partialorder %v62, 0.1
    %vm287 = vcmp.ge.f32.partialorder %v63, 0.1
    %vm288 = vcmp.ge.f32.partialorder %v64, 0.1
    %vm289 = vcmp.ge.f32.partialorder %v65, 0.1
    %vm290 = vcmp.ge.f32.partialorder %v66, 0.1
    %vm291 = vcmp.ge.f32.partialorder %v67, 0.1
    %vm292 = vcmp.ge.f32.partialorder %v68, 0.1
    %vm293 = vcmp.ge.f32.partialorder %v69, 0.1
    %vm294 = vcmp.ge.f32.partialorder %v70, 0.1
    %vm295 = vcmp.ge.f32.partialorder %v71, 0.1
    %vm296 = vcmp.ge.f32.partialorder %v72, 0.1
    %vm297 = vcmp.ge.f32.partialorder %v73, 0.1
    %vm298 = vcmp.ge.f32.partialorder %v74, 0.1
    %vm299 = vcmp.ge.f32.partialorder %v75, 0.1
    %vm300 = vcmp.ge.f32.partialorder %v76, 0.1
    %vm301 = vcmp.ge.f32.partialorder %v77, 0.1
    %vm302 = vcmp.ge.f32.partialorder %v78, 0.1
    %vm303 = vcmp.ge.f32.partialorder %v79, 0.1
    %vm304 = vcmp.ge.f32.partialorder %v80, 0.1
    %vm305 = vcmp.ge.f32.partialorder %v81, 0.1
    %vm306 = vcmp.ge.f32.partialorder %v82, 0.1
    %vm307 = vcmp.ge.f32.partialorder %v83, 0.1
    %vm308 = vcmp.ge.f32.partialorder %v84, 0.1
    %vm309 = vcmp.ge.f32.partialorder %v85, 0.1
    %vm310 = vcmp.ge.f32.partialorder %v86, 0.1
    %vm311 = vcmp.ge.f32.partialorder %v87, 0.1
    %vm312 = vcmp.ge.f32.partialorder %v88, 0.1
    %vm313 = vcmp.ge.f32.partialorder %v89, 0.1
    %vm314 = vcmp.ge.f32.partialorder %v90, 0.1
    %vm315 = vcmp.ge.f32.partialorder %v91, 0.1
    %vm316 = vcmp.ge.f32.partialorder %v92, 0.1
    %vm317 = vcmp.ge.f32.partialorder %v93, 0.1
    %vm318 = vcmp.ge.f32.partialorder %v94, 0.1
    %vm319 = vcmp.ge.f32.partialorder %v95, 0.1
    %vm320 = vcmp.ge.f32.partialorder %v96, 0.1
    %vm321 = vcmp.ge.f32.partialorder %v97, 0.1
    %vm322 = vcmp.ge.f32.partialorder %v98, 0.1
    %vm323 = vcmp.ge.f32.partialorder %v99, 0.1
    %vm324 = vcmp.ge.f32.partialorder %v100, 0.1
    %vm325 = vcmp.ge.f32.partialorder %v101, 0.1
    %vm326 = vcmp.ge.f32.partialorder %v102, 0.1
    %vm327 = vcmp.ge.f32.partialorder %v103, 0.1
    %vm328 = vcmp.ge.f32.partialorder %v104, 0.1
    %vm329 = vcmp.ge.f32.partialorder %v105, 0.1
    %vm330 = vcmp.ge.f32.partialorder %v106, 0.1
    %vm331 = vcmp.ge.f32.partialorder %v107, 0.1
    %vm332 = vcmp.ge.f32.partialorder %v108, 0.1
    %vm333 = vcmp.ge.f32.partialorder %v109, 0.1
    %vm334 = vcmp.ge.f32.partialorder %v110, 0.1
    %vm335 = vcmp.ge.f32.partialorder %v111, 0.1
    %vm336 = vcmp.ge.f32.partialorder %v112, 0.1
    %vm337 = vcmp.ge.f32.partialorder %v113, 0.1
    %vm338 = vcmp.ge.f32.partialorder %v114, 0.1
    %vm339 = vcmp.ge.f32.partialorder %v115, 0.1
    %vm340 = vcmp.ge.f32.partialorder %v116, 0.1
    %vm341 = vcmp.ge.f32.partialorder %v117, 0.1
    %vm342 = vcmp.ge.f32.partialorder %v118, 0.1
    %vm343 = vcmp.ge.f32.partialorder %v119, 0.1
    %vm344 = vcmp.ge.f32.partialorder %v120, 0.1
    %vm345 = vcmp.ge.f32.partialorder %v121, 0.1
    %vm346 = vcmp.ge.f32.partialorder %v122, 0.1
    %vm347 = vcmp.ge.f32.partialorder %v123, 0.1
    %vm348 = vcmp.ge.f32.partialorder %v124, 0.1
    %vm349 = vcmp.ge.f32.partialorder %v125, 0.1
    %vm350 = vcmp.ge.f32.partialorder %v126, 0.1
    %vm351 = vcmp.ge.f32.partialorder %v127, 0.1
    %vm352 = vcmp.ge.f32.partialorder %v128, 0.1
    %vm353 = vcmp.ge.f32.partialorder %v129, 0.1
    %vm354 = vcmp.ge.f32.partialorder %v130, 0.1
    %vm355 = vcmp.ge.f32.partialorder %v131, 0.1
    %vm356 = vcmp.ge.f32.partialorder %v132, 0.1
    %vm357 = vcmp.ge.f32.partialorder %v133, 0.1
    %vm358 = vcmp.ge.f32.partialorder %v134, 0.1
    %vm359 = vcmp.ge.f32.partialorder %v135, 0.1
    %vm360 = vcmp.ge.f32.partialorder %v136, 0.1
    %vm361 = vcmp.ge.f32.partialorder %v137, 0.1
    %vm362 = vcmp.ge.f32.partialorder %v138, 0.1
    %vm363 = vcmp.ge.f32.partialorder %v139, 0.1
    %vm364 = vcmp.ge.f32.partialorder %v140, 0.1
    %vm365 = vcmp.ge.f32.partialorder %v141, 0.1
    %vm366 = vcmp.ge.f32.partialorder %v142, 0.1
    %vm367 = vcmp.ge.f32.partialorder %v143, 0.1
    %vm368 = vcmp.ge.f32.partialorder %v144, 0.1
    %vm369 = vcmp.ge.f32.partialorder %v145, 0.1
    %vm370 = vcmp.ge.f32.partialorder %v146, 0.1
    %vm371 = vcmp.ge.f32.partialorder %v147, 0.1
    %vm372 = vcmp.ge.f32.partialorder %v148, 0.1
    %vm373 = vcmp.ge.f32.partialorder %v149, 0.1
    %vm374 = vcmp.ge.f32.partialorder %v150, 0.1
    %vm375 = vcmp.ge.f32.partialorder %v151, 0.1
    %vm376 = vcmp.ge.f32.partialorder %v152, 0.1
    %vm377 = vcmp.ge.f32.partialorder %v153, 0.1
    %vm378 = vcmp.ge.f32.partialorder %v154, 0.1
    %vm379 = vcmp.ge.f32.partialorder %v155, 0.1
    %vm380 = vcmp.ge.f32.partialorder %v156, 0.1
    %vm381 = vcmp.ge.f32.partialorder %v157, 0.1
    %vm382 = vcmp.ge.f32.partialorder %v158, 0.1
    %vm383 = vcmp.ge.f32.partialorder %v159, 0.1
    %vm384 = vcmp.ge.f32.partialorder %v160, 0.1
    %vm385 = vcmp.ge.f32.partialorder %v161, 0.1
    %vm386 = vcmp.ge.f32.partialorder %v162, 0.1
    %vm387 = vcmp.ge.f32.partialorder %v163, 0.1
    %vm388 = vcmp.ge.f32.partialorder %v164, 0.1
    %vm389 = vcmp.ge.f32.partialorder %v165, 0.1
    %vm390 = vcmp.ge.f32.partialorder %v166, 0.1
    %vm391 = vcmp.ge.f32.partialorder %v167, 0.1
    %vm392 = vcmp.ge.f32.partialorder %v168, 0.1
    %vm393 = vcmp.ge.f32.partialorder %v169, 0.1
    %vm394 = vcmp.ge.f32.partialorder %v170, 0.1
    %vm395 = vcmp.ge.f32.partialorder %v171, 0.1
    %vm396 = vcmp.ge.f32.partialorder %v172, 0.1
    %vm397 = vcmp.ge.f32.partialorder %v173, 0.1
    %vm398 = vcmp.ge.f32.partialorder %v174, 0.1
    %vm399 = vcmp.ge.f32.partialorder %v175, 0.1
    %vm400 = vcmp.ge.f32.partialorder %v176, 0.1
    %vm401 = vcmp.ge.f32.partialorder %v177, 0.1
    %vm402 = vcmp.ge.f32.partialorder %v178, 0.1
    %vm403 = vcmp.ge.f32.partialorder %v179, 0.1
    %vm404 = vcmp.ge.f32.partialorder %v180, 0.1
    %vm405 = vcmp.ge.f32.partialorder %v181, 0.1
    %vm406 = vcmp.ge.f32.partialorder %v182, 0.1
    %vm407 = vcmp.ge.f32.partialorder %v183, 0.1
    %vm408 = vcmp.ge.f32.partialorder %v184, 0.1
    %vm409 = vcmp.ge.f32.partialorder %v185, 0.1
    %vm410 = vcmp.ge.f32.partialorder %v186, 0.1
    %vm411 = vcmp.ge.f32.partialorder %v187, 0.1
    %vm412 = vcmp.ge.f32.partialorder %v188, 0.1
    %vm413 = vcmp.ge.f32.partialorder %v189, 0.1
    %vm414 = vcmp.ge.f32.partialorder %v190, 0.1
    %vm415 = vcmp.ge.f32.partialorder %v191, 0.1
    %vm416 = vcmp.ge.f32.partialorder %v192, 0.1
    %vm417 = vcmp.ge.f32.partialorder %v193, 0.1
    %vm418 = vcmp.ge.f32.partialorder %v194, 0.1
    %vm419 = vcmp.ge.f32.partialorder %v195, 0.1
    %vm420 = vcmp.ge.f32.partialorder %v196, 0.1
    %vm421 = vcmp.ge.f32.partialorder %v197, 0.1
    %vm422 = vcmp.ge.f32.partialorder %v198, 0.1
    %vm423 = vcmp.ge.f32.partialorder %v199, 0.1
    %vm424 = vcmp.ge.f32.partialorder %v200, 0.1
    %vm425 = vcmp.ge.f32.partialorder %v201, 0.1
    %vm426 = vcmp.ge.f32.partialorder %v202, 0.1
    %vm427 = vcmp.ge.f32.partialorder %v203, 0.1
    %vm428 = vcmp.ge.f32.partialorder %v204, 0.1
    %vm429 = vcmp.ge.f32.partialorder %v205, 0.1
    %vm430 = vcmp.ge.f32.partialorder %v206, 0.1
    %vm431 = vcmp.ge.f32.partialorder %v207, 0.1
    %vm432 = vcmp.ge.f32.partialorder %v208, 0.1
    %vm433 = vcmp.ge.f32.partialorder %v209, 0.1
    %vm434 = vcmp.ge.f32.partialorder %v210, 0.1
    %vm435 = vcmp.ge.f32.partialorder %v211, 0.1
    %vm436 = vcmp.ge.f32.partialorder %v212, 0.1
    %vm437 = vcmp.ge.f32.partialorder %v213, 0.1
    %vm438 = vcmp.ge.f32.partialorder %v214, 0.1
    %vm439 = vcmp.ge.f32.partialorder %v215, 0.1
    %vm440 = vcmp.ge.f32.partialorder %v216, 0.1
    %vm441 = vcmp.ge.f32.partialorder %v217, 0.1
    %vm442 = vcmp.ge.f32.partialorder %v218, 0.1
    %vm443 = vcmp.ge.f32.partialorder %v219, 0.1
    %vm444 = vcmp.ge.f32.partialorder %v220, 0.1
    %vm445 = vcmp.ge.f32.partialorder %v221, 0.1
    %vm446 = vcmp.ge.f32.partialorder %v222, 0.1
    %vm447 = vcmp.ge.f32.partialorder %v223, 0.1
    %vm448 = vcmp.ge.f32.partialorder %v224, 0.1
    %vm449 = vcmp.ge.f32.partialorder %v225, 0.1
    %vm450 = vcmp.ge.f32.partialorder %v226, 0.1
    %vm451 = vcmp.ge.f32.partialorder %v227, 0.1
    %vm452 = vcmp.ge.f32.partialorder %v228, 0.1
    %vm453 = vcmp.ge.f32.partialorder %v229, 0.1
    %vm454 = vcmp.ge.f32.partialorder %v230, 0.1
    %vm455 = vcmp.ge.f32.partialorder %v231, 0.1
    %vm456 = vcmp.ge.f32.partialorder %v232, 0.1
    %vm457 = vcmp.ge.f32.partialorder %v233, 0.1
    %vm458 = vcmp.ge.f32.partialorder %v234, 0.1
    %vm459 = vcmp.ge.f32.partialorder %v235, 0.1
    %vm460 = vcmp.ge.f32.partialorder %v236, 0.1
    %vm461 = vcmp.ge.f32.partialorder %v237, 0.1
    %vm462 = vcmp.ge.f32.partialorder %v238, 0.1
    %vm463 = vcmp.ge.f32.partialorder %v239, 0.1
    %vm464 = vcmp.ge.f32.partialorder %v240, 0.1
    %vm465 = vcmp.ge.f32.partialorder %v241, 0.1
    %v466 = vld [vmem:[%s0] sm:$0xff]
    %v467 = vld [vmem:[%s0 + $0x8] sm:$0xff]
    %v468 = vld [vmem:[%s0 + $0x10] sm:$0xff]
    %v469 = vld [vmem:[%s0 + $0x18] sm:$0xff]
    %v470 = vld [vmem:[%s0 + $0x20] sm:$0xff]
    %v471 = vld [vmem:[%s0 + $0x28] sm:$0xff]
    %v472 = vld [vmem:[%s0 + $0x30] sm:$0xff]
    %v473 = vld [vmem:[%s0 + $0x38] sm:$0xff]
    %v474 = vld [vmem:[%s0 + $0x40] sm:$0xff]
    %v475 = vld [vmem:[%s0 + $0x48] sm:$0xff]
    %v476 = vld [vmem:[%s0 + $0x50] sm:$0xff]
    %v477 = vld [vmem:[%s0 + $0x58] sm:$0xff]
    %v478 = vld [vmem:[%s0 + $0x60] sm:$0xff]
    %v479 = vld [vmem:[%s0 + $0x68] sm:$0xff]
    %v480 = vld [vmem:[%s0 + $0x70] sm:$0xff]
    %v481 = vld [vmem:[%s0 + $0x78] sm:$0xff]
    %v482 = vld [vmem:[%s0 + $0x80] sm:$0xff]
    %v483 = vld [vmem:[%s0 + $0x88] sm:$0xff]
    %v484 = vld [vmem:[%s0 + $0x90] sm:$0xff]
    %v485 = vld [vmem:[%s0 + $0x98] sm:$0xff]
    %v486 = vld [vmem:[%s0 + $0xa0] sm:$0xff]
    %v487 = vld [vmem:[%s0 + $0xa8] sm:$0xff]
    %v488 = vld [vmem:[%s0 + $0xb0] sm:$0xff]
    %v489 = vld [vmem:[%s0 + $0xb8] sm:$0xff]
    %v490 = vld [vmem:[%s0 + $0xc0] sm:$0xff]
    %v491 = vld [vmem:[%s0 + $0xc8] sm:$0xff]
    %v492 = vld [vmem:[%s0 + $0xd0] sm:$0xff]
    %v493 = vld [vmem:[%s0 + $0xd8] sm:$0xff]
    %v494 = vld [vmem:[%s0 + $0xe0] sm:$0xff]
    %v495 = vld [vmem:[%s0 + $0xe8] sm:$0xff]
    %v496 = vld [vmem:[%s0 + $0xf0] sm:$0xff]
    %v497 = vld [vmem:[%s0 + $0xf8] sm:$0xff]
    %v498 = vld [vmem:[%s0 + $0x100] sm:$0xff]
    %v499 = vld [vmem:[%s0 + $0x108] sm:$0xff]
    %v500 = vld [vmem:[%s0 + $0x110] sm:$0xff]
    %v501 = vld [vmem:[%s0 + $0x118] sm:$0xff]
    %v502 = vld [vmem:[%s0 + $0x120] sm:$0xff]
    %v503 = vld [vmem:[%s0 + $0x128] sm:$0xff]
    %v504 = vld [vmem:[%s0 + $0x130] sm:$0xff]
    %v505 = vld [vmem:[%s0 + $0x138] sm:$0xff]
    %v506 = vld [vmem:[%s0 + $0x140] sm:$0xff]
    %v507 = vld [vmem:[%s0 + $0x148] sm:$0xff]
    %v508 = vld [vmem:[%s0 + $0x150] sm:$0xff]
    %v509 = vld [vmem:[%s0 + $0x158] sm:$0xff]
    %v510 = vld [vmem:[%s0 + $0x160] sm:$0xff]
    %v511 = vld [vmem:[%s0 + $0x168] sm:$0xff]
    %v512 = vld [vmem:[%s0 + $0x170] sm:$0xff]
    %v513 = vld [vmem:[%s0 + $0x178] sm:$0xff]
    %v514 = vld [vmem:[%s0 + $0x180] sm:$0xff]
    %v515 = vld [vmem:[%s0 + $0x188] sm:$0xff]
    %v516 = vld [vmem:[%s0 + $0x190] sm:$0xff]
    %v517 = vld [vmem:[%s0 + $0x198] sm:$0xff]
    %v518 = vld [vmem:[%s0 + $0x1a0] sm:$0xff]
    %v519 = vld [vmem:[%s0 + $0x1a8] sm:$0xff]
    %v520 = vld [vmem:[%s0 + $0x1b0] sm:$0xff]
    %v521 = vld [vmem:[%s0 + $0x1b8] sm:$0xff]
    %v522 = vld [vmem:[%s0 + $0x1c0] sm:$0xff]
    %v523 = vld [vmem:[%s0 + $0x1c8] sm:$0xff]
    %v524 = vld [vmem:[%s0 + $0x1d0] sm:$0xff]
    %v525 = vld [vmem:[%s0 + $0x1d8] sm:$0xff]
    %v526 = vld [vmem:[%s0 + $0x1e0] sm:$0xff]
    %v527 = vld [vmem:[%s0 + $0x1e8] sm:$0xff]
    %v528 = vld [vmem:[%s0 + $0x1f0] sm:$0xff]
    %v529 = vld [vmem:[%s0 + $0x1f8] sm:$0xff]
    %v530 = vld [vmem:[%s0 + $0x200] sm:$0xff]
    %v531 = vld [vmem:[%s0 + $0x208] sm:$0xff]
    %v532 = vld [vmem:[%s0 + $0x210] sm:$0xff]
    %v533 = vld [vmem:[%s0 + $0x218] sm:$0xff]
    %v534 = vld [vmem:[%s0 + $0x220] sm:$0xff]
    %v535 = vld [vmem:[%s0 + $0x228] sm:$0xff]
    %v536 = vld [vmem:[%s0 + $0x230] sm:$0xff]
    %v537 = vld [vmem:[%s0 + $0x238] sm:$0xff]
    %v538 = vld [vmem:[%s0 + $0x240] sm:$0xff]
    %v539 = vld [vmem:[%s0 + $0x248] sm:$0xff]
    %v540 = vld [vmem:[%s0 + $0x250] sm:$0xff]
    %v541 = vld [vmem:[%s0 + $0x258] sm:$0xff]
    %v542 = vld [vmem:[%s0 + $0x260] sm:$0xff]
    %v543 = vld [vmem:[%s0 + $0x268] sm:$0xff]
    %v544 = vld [vmem:[%s0 + $0x270] sm:$0xff]
    %v545 = vld [vmem:[%s0 + $0x278] sm:$0xff]
    %v546 = vld [vmem:[%s0 + $0x280] sm:$0xff]
    %v547 = vld [vmem:[%s0 + $0x288] sm:$0xff]
    %v548 = vld [vmem:[%s0 + $0x290] sm:$0xff]
    %v549 = vld [vmem:[%s0 + $0x298] sm:$0xff]
    %v550 = vld [vmem:[%s0 + $0x2a0] sm:$0xff]
    %v551 = vld [vmem:[%s0 + $0x2a8] sm:$0xff]
    %v552 = vld [vmem:[%s0 + $0x2b0] sm:$0xff]
    %v553 = vld [vmem:[%s0 + $0x2b8] sm:$0xff]
    %v554 = vld [vmem:[%s0 + $0x2c0] sm:$0xff]
    %v555 = vld [vmem:[%s0 + $0x2c8] sm:$0xff]
    %v556 = vld [vmem:[%s0 + $0x2d0] sm:$0xff]
    %v557 = vld [vmem:[%s0 + $0x2d8] sm:$0xff]
    %v558 = vld [vmem:[%s0 + $0x2e0] sm:$0xff]
    %v559 = vld [vmem:[%s0 + $0x2e8] sm:$0xff]
    %v560 = vld [vmem:[%s0 + $0x2f0] sm:$0xff]
    %v561 = vld [vmem:[%s0 + $0x2f8] sm:$0xff]
    %v562 = vld [vmem:[%s0 + $0x300] sm:$0xff]
    %v563 = vld [vmem:[%s0 + $0x308] sm:$0xff]
    %v564 = vld [vmem:[%s0 + $0x310] sm:$0xff]
    %v565 = vld [vmem:[%s0 + $0x318] sm:$0xff]
    %v566 = vld [vmem:[%s0 + $0x320] sm:$0xff]
    %v567 = vld [vmem:[%s0 + $0x328] sm:$0xff]
    %v568 = vld [vmem:[%s0 + $0x330] sm:$0xff]
    %v569 = vld [vmem:[%s0 + $0x338] sm:$0xff]
    %v570 = vld [vmem:[%s0 + $0x340] sm:$0xff]
    %v571 = vld [vmem:[%s0 + $0x348] sm:$0xff]
    %v572 = vld [vmem:[%s0 + $0x350] sm:$0xff]
    %v573 = vld [vmem:[%s0 + $0x358] sm:$0xff]
    %v574 = vld [vmem:[%s0 + $0x360] sm:$0xff]
    %v575 = vld [vmem:[%s0 + $0x368] sm:$0xff]
    %v576 = vld [vmem:[%s0 + $0x370] sm:$0xff]
    %v577 = vld [vmem:[%s0 + $0x378] sm:$0xff]
    %v578 = vld [vmem:[%s0 + $0x380] sm:$0xff]
    %v579 = vld [vmem:[%s0 + $0x388] sm:$0xff]
    %v580 = vld [vmem:[%s0 + $0x390] sm:$0xff]
    %v581 = vld [vmem:[%s0 + $0x398] sm:$0xff]
    %v582 = vld [vmem:[%s0 + $0x3a0] sm:$0xff]
    %v583 = vld [vmem:[%s0 + $0x3a8] sm:$0xff]
    %v584 = vld [vmem:[%s0 + $0x3b0] sm:$0xff]
    %v585 = vld [vmem:[%s0 + $0x3b8] sm:$0xff]
    %v586 = vld [vmem:[%s0 + $0x3c0] sm:$0xff]
    %v587 = vld [vmem:[%s0 + $0x3c8] sm:$0xff]
    %v588 = vld [vmem:[%s0 + $0x3d0] sm:$0xff]
    %v589 = vld [vmem:[%s0 + $0x3d8] sm:$0xff]
    %v590 = vld [vmem:[%s0 + $0x3e0] sm:$0xff]
    %v591 = vld [vmem:[%s0 + $0x3e8] sm:$0xff]
    %v592 = vld [vmem:[%s0 + $0x3f0] sm:$0xff]
    %v593 = vld [vmem:[%s0 + $0x3f8] sm:$0xff]
    %v594 = vld [vmem:[%s0 + $0x400] sm:$0xff]
    %v595 = vld [vmem:[%s0 + $0x408] sm:$0xff]
    %v596 = vld [vmem:[%s0 + $0x410] sm:$0xff]
    %v597 = vld [vmem:[%s0 + $0x418] sm:$0xff]
    %v598 = vld [vmem:[%s0 + $0x420] sm:$0xff]
    %v599 = vld [vmem:[%s0 + $0x428] sm:$0xff]
    %v600 = vld [vmem:[%s0 + $0x430] sm:$0xff]
    %v601 = vld [vmem:[%s0 + $0x438] sm:$0xff]
    %v602 = vld [vmem:[%s0 + $0x440] sm:$0xff]
    %v603 = vld [vmem:[%s0 + $0x448] sm:$0xff]
    %v604 = vld [vmem:[%s0 + $0x450] sm:$0xff]
    %v605 = vld [vmem:[%s0 + $0x458] sm:$0xff]
    %v606 = vld [vmem:[%s0 + $0x460] sm:$0xff]
    %v607 = vld [vmem:[%s0 + $0x468] sm:$0xff]
    %v608 = vld [vmem:[%s0 + $0x470] sm:$0xff]
    %v609 = vld [vmem:[%s0 + $0x478] sm:$0xff]
    %v610 = vld [vmem:[%s0 + $0x480] sm:$0xff]
    %v611 = vld [vmem:[%s0 + $0x488] sm:$0xff]
    %v612 = vld [vmem:[%s0 + $0x490] sm:$0xff]
    %v613 = vld [vmem:[%s0 + $0x498] sm:$0xff]
    %v614 = vld [vmem:[%s0 + $0x4a0] sm:$0xff]
    %v615 = vld [vmem:[%s0 + $0x4a8] sm:$0xff]
    %v616 = vld [vmem:[%s0 + $0x4b0] sm:$0xff]
    %v617 = vld [vmem:[%s0 + $0x4b8] sm:$0xff]
    %v618 = vld [vmem:[%s0 + $0x4c0] sm:$0xff]
    %v619 = vld [vmem:[%s0 + $0x4c8] sm:$0xff]
    %v620 = vld [vmem:[%s0 + $0x4d0] sm:$0xff]
    %v621 = vld [vmem:[%s0 + $0x4d8] sm:$0xff]
    %v622 = vld [vmem:[%s0 + $0x4e0] sm:$0xff]
    %v623 = vld [vmem:[%s0 + $0x4e8] sm:$0xff]
    %v624 = vld [vmem:[%s0 + $0x4f0] sm:$0xff]
    %v625 = vld [vmem:[%s0 + $0x4f8] sm:$0xff]
    %v626 = vld [vmem:[%s0 + $0x500] sm:$0xff]
    %v627 = vld [vmem:[%s0 + $0x508] sm:$0xff]
    %v628 = vld [vmem:[%s0 + $0x510] sm:$0xff]
    %v629 = vld [vmem:[%s0 + $0x518] sm:$0xff]
    %v630 = vld [vmem:[%s0 + $0x520] sm:$0xff]
    %v631 = vld [vmem:[%s0 + $0x528] sm:$0xff]
    %v632 = vld [vmem:[%s0 + $0x530] sm:$0xff]
    %v633 = vld [vmem:[%s0 + $0x538] sm:$0xff]
    %v634 = vld [vmem:[%s0 + $0x540] sm:$0xff]
    %v635 = vld [vmem:[%s0 + $0x548] sm:$0xff]
    %v636 = vld [vmem:[%s0 + $0x550] sm:$0xff]
    %v637 = vld [vmem:[%s0 + $0x558] sm:$0xff]
    %v638 = vld [vmem:[%s0 + $0x560] sm:$0xff]
    %v639 = vld [vmem:[%s0 + $0x568] sm:$0xff]
    %v640 = vld [vmem:[%s0 + $0x570] sm:$0xff]
    %v641 = vld [vmem:[%s0 + $0x578] sm:$0xff]
    %v642 = vld [vmem:[%s0 + $0x580] sm:$0xff]
    %v643 = vld [vmem:[%s0 + $0x588] sm:$0xff]
    %v644 = vld [vmem:[%s0 + $0x590] sm:$0xff]
    %v645 = vld [vmem:[%s0 + $0x598] sm:$0xff]
    %v646 = vld [vmem:[%s0 + $0x5a0] sm:$0xff]
    %v647 = vld [vmem:[%s0 + $0x5a8] sm:$0xff]
    %v648 = vld [vmem:[%s0 + $0x5b0] sm:$0xff]
    %v649 = vld [vmem:[%s0 + $0x5b8] sm:$0xff]
    %v650 = vld [vmem:[%s0 + $0x5c0] sm:$0xff]
    %v651 = vld [vmem:[%s0 + $0x5c8] sm:$0xff]
    %v652 = vld [vmem:[%s0 + $0x5d0] sm:$0xff]
    %v653 = vld [vmem:[%s0 + $0x5d8] sm:$0xff]
    %v654 = vld [vmem:[%s0 + $0x5e0] sm:$0xff]
    %v655 = vld [vmem:[%s0 + $0x5e8] sm:$0xff]
    %v656 = vld [vmem:[%s0 + $0x5f0] sm:$0xff]
    %v657 = vld [vmem:[%s0 + $0x5f8] sm:$0xff]
    %v658 = vld [vmem:[%s0 + $0x600] sm:$0xff]
    %v659 = vld [vmem:[%s0 + $0x608] sm:$0xff]
    %v660 = vld [vmem:[%s0 + $0x610] sm:$0xff]
    %v661 = vld [vmem:[%s0 + $0x618] sm:$0xff]
    %v662 = vld [vmem:[%s0 + $0x620] sm:$0xff]
    %v663 = vld [vmem:[%s0 + $0x628] sm:$0xff]
    %v664 = vld [vmem:[%s0 + $0x630] sm:$0xff]
    %v665 = vld [vmem:[%s0 + $0x638] sm:$0xff]
    %v666 = vld [vmem:[%s0 + $0x640] sm:$0xff]
    %v667 = vld [vmem:[%s0 + $0x648] sm:$0xff]
    %v668 = vld [vmem:[%s0 + $0x650] sm:$0xff]
    %v669 = vld [vmem:[%s0 + $0x658] sm:$0xff]
    %v670 = vld [vmem:[%s0 + $0x660] sm:$0xff]
    %v671 = vld [vmem:[%s0 + $0x668] sm:$0xff]
    %v672 = vld [vmem:[%s0 + $0x670] sm:$0xff]
    %v673 = vld [vmem:[%s0 + $0x678] sm:$0xff]
    %v674 = vld [vmem:[%s0 + $0x680] sm:$0xff]
    %v675 = vld [vmem:[%s0 + $0x688] sm:$0xff]
    %v676 = vld [vmem:[%s0 + $0x690] sm:$0xff]
    %v677 = vld [vmem:[%s0 + $0x698] sm:$0xff]
    %v678 = vld [vmem:[%s0 + $0x6a0] sm:$0xff]
    %v679 = vld [vmem:[%s0 + $0x6a8] sm:$0xff]
    %v680 = vld [vmem:[%s0 + $0x6b0] sm:$0xff]
    %v681 = vld [vmem:[%s0 + $0x6b8] sm:$0xff]
    %v682 = vld [vmem:[%s0 + $0x6c0] sm:$0xff]
    %v683 = vld [vmem:[%s0 + $0x6c8] sm:$0xff]
    %v684 = vld [vmem:[%s0 + $0x6d0] sm:$0xff]
    %v685 = vld [vmem:[%s0 + $0x6d8] sm:$0xff]
    %v686 = vld [vmem:[%s0 + $0x6e0] sm:$0xff]
    %v687 = vld [vmem:[%s0 + $0x6e8] sm:$0xff]
    %v688 = vld [vmem:[%s0 + $0x6f0] sm:$0xff]
    %v689 = vld [vmem:[%s0 + $0x6f8] sm:$0xff]
    %v690 = vsel %vm242, %v466, 0.0
    %v691 = vsel %vm243, %v467, 0.0
    %v692 = vsel %vm244, %v468, 0.0
    %v693 = vsel %vm245, %v469, 0.0
    %v694 = vsel %vm246, %v470, 0.0
    %v695 = vsel %vm247, %v471, 0.0
    %v696 = vsel %vm248, %v472, 0.0
    %v697 = vsel %vm249, %v473, 0.0
    %v698 = vsel %vm250, %v474, 0.0
    %v699 = vsel %vm251, %v475, 0.0
    %v700 = vsel %vm252, %v476, 0.0
    %v701 = vsel %vm253, %v477, 0.0
    %v702 = vsel %vm254, %v478, 0.0
    %v703 = vsel %vm255, %v479, 0.0
    %v704 = vsel %vm256, %v480, 0.0
    %v705 = vsel %vm257, %v481, 0.0
    %v706 = vsel %vm258, %v482, 0.0
    %v707 = vsel %vm259, %v483, 0.0
    %v708 = vsel %vm260, %v484, 0.0
    %v709 = vsel %vm261, %v485, 0.0
    %v710 = vsel %vm262, %v486, 0.0
    %v711 = vsel %vm263, %v487, 0.0
    %v712 = vsel %vm264, %v488, 0.0
    %v713 = vsel %vm265, %v489, 0.0
    %v714 = vsel %vm266, %v490, 0.0
    %v715 = vsel %vm267, %v491, 0.0
    %v716 = vsel %vm268, %v492, 0.0
    %v717 = vsel %vm269, %v493, 0.0
    %v718 = vsel %vm270, %v494, 0.0
    %v719 = vsel %vm271, %v495, 0.0
    %v720 = vsel %vm272, %v496, 0.0
    %v721 = vsel %vm273, %v497, 0.0
    %v722 = vsel %vm274, %v498, 0.0
    %v723 = vsel %vm275, %v499, 0.0
    %v724 = vsel %vm276, %v500, 0.0
    %v725 = vsel %vm277, %v501, 0.0
    %v726 = vsel %vm278, %v502, 0.0
    %v727 = vsel %vm279, %v503, 0.0
    %v728 = vsel %vm280, %v504, 0.0
    %v729 = vsel %vm281, %v505, 0.0
    %v730 = vsel %vm282, %v506, 0.0
    %v731 = vsel %vm283, %v507, 0.0
    %v732 = vsel %vm284, %v508, 0.0
    %v733 = vsel %vm285, %v509, 0.0
    %v734 = vsel %vm286, %v510, 0.0
    %v735 = vsel %vm287, %v511, 0.0
    %v736 = vsel %vm288, %v512, 0.0
    %v737 = vsel %vm289, %v513, 0.0
    %v738 = vsel %vm290, %v514, 0.0
    %v739 = vsel %vm291, %v515, 0.0
    %v740 = vsel %vm292, %v516, 0.0
    %v741 = vsel %vm293, %v517, 0.0
    %v742 = vsel %vm294, %v518, 0.0
    %v743 = vsel %vm295, %v519, 0.0
    %v744 = vsel %vm296, %v520, 0.0
    %v745 = vsel %vm297, %v521, 0.0
    %v746 = vsel %vm298, %v522, 0.0
    %v747 = vsel %vm299, %v523, 0.0
    %v748 = vsel %vm300, %v524, 0.0
    %v749 = vsel %vm301, %v525, 0.0
    %v750 = vsel %vm302, %v526, 0.0
    %v751 = vsel %vm303, %v527, 0.0
    %v752 = vsel %vm304, %v528, 0.0
    %v753 = vsel %vm305, %v529, 0.0
    %v754 = vsel %vm306, %v530, 0.0
    %v755 = vsel %vm307, %v531, 0.0
    %v756 = vsel %vm308, %v532, 0.0
    %v757 = vsel %vm309, %v533, 0.0
    %v758 = vsel %vm310, %v534, 0.0
    %v759 = vsel %vm311, %v535, 0.0
    %v760 = vsel %vm312, %v536, 0.0
    %v761 = vsel %vm313, %v537, 0.0
    %v762 = vsel %vm314, %v538, 0.0
    %v763 = vsel %vm315, %v539, 0.0
    %v764 = vsel %vm316, %v540, 0.0
    %v765 = vsel %vm317, %v541, 0.0
    %v766 = vsel %vm318, %v542, 0.0
    %v767 = vsel %vm319, %v543, 0.0
    %v768 = vsel %vm320, %v544, 0.0
    %v769 = vsel %vm321, %v545, 0.0
    %v770 = vsel %vm322, %v546, 0.0
    %v771 = vsel %vm323, %v547, 0.0
    %v772 = vsel %vm324, %v548, 0.0
    %v773 = vsel %vm325, %v549, 0.0
    %v774 = vsel %vm326, %v550, 0.0
    %v775 = vsel %vm327, %v551, 0.0
    %v776 = vsel %vm328, %v552, 0.0
    %v777 = vsel %vm329, %v553, 0.0
    %v778 = vsel %vm330, %v554, 0.0
    %v779 = vsel %vm331, %v555, 0.0
    %v780 = vsel %vm332, %v556, 0.0
    %v781 = vsel %vm333, %v557, 0.0
    %v782 = vsel %vm334, %v558, 0.0
    %v783 = vsel %vm335, %v559, 0.0
    %v784 = vsel %vm336, %v560, 0.0
    %v785 = vsel %vm337, %v561, 0.0
    %v786 = vsel %vm338, %v562, 0.0
    %v787 = vsel %vm339, %v563, 0.0
    %v788 = vsel %vm340, %v564, 0.0
    %v789 = vsel %vm341, %v565, 0.0
    %v790 = vsel %vm342, %v566, 0.0
    %v791 = vsel %vm343, %v567, 0.0
    %v792 = vsel %vm344, %v568, 0.0
    %v793 = vsel %vm345, %v569, 0.0
    %v794 = vsel %vm346, %v570, 0.0
    %v795 = vsel %vm347, %v571, 0.0
    %v796 = vsel %vm348, %v572, 0.0
    %v797 = vsel %vm349, %v573, 0.0
    %v798 = vsel %vm350, %v574, 0.0
    %v799 = vsel %vm351, %v575, 0.0
    %v800 = vsel %vm352, %v576, 0.0
    %v801 = vsel %vm353, %v577, 0.0
    %v802 = vsel %vm354, %v578, 0.0
    %v803 = vsel %vm355, %v579, 0.0
    %v804 = vsel %vm356, %v580, 0.0
    %v805 = vsel %vm357, %v581, 0.0
    %v806 = vsel %vm358, %v582, 0.0
    %v807 = vsel %vm359, %v583, 0.0
    %v808 = vsel %vm360, %v584, 0.0
    %v809 = vsel %vm361, %v585, 0.0
    %v810 = vsel %vm362, %v586, 0.0
    %v811 = vsel %vm363, %v587, 0.0
    %v812 = vsel %vm364, %v588, 0.0
    %v813 = vsel %vm365, %v589, 0.0
    %v814 = vsel %vm366, %v590, 0.0
    %v815 = vsel %vm367, %v591, 0.0
    %v816 = vsel %vm368, %v592, 0.0
    %v817 = vsel %vm369, %v593, 0.0
    %v818 = vsel %vm370, %v594, 0.0
    %v819 = vsel %vm371, %v595, 0.0
    %v820 = vsel %vm372, %v596, 0.0
    %v821 = vsel %vm373, %v597, 0.0
    %v822 = vsel %vm374, %v598, 0.0
    %v823 = vsel %vm375, %v599, 0.0
    %v824 = vsel %vm376, %v600, 0.0
    %v825 = vsel %vm377, %v601, 0.0
    %v826 = vsel %vm378, %v602, 0.0
    %v827 = vsel %vm379, %v603, 0.0
    %v828 = vsel %vm380, %v604, 0.0
    %v829 = vsel %vm381, %v605, 0.0
    %v830 = vsel %vm382, %v606, 0.0
    %v831 = vsel %vm383, %v607, 0.0
    %v832 = vsel %vm384, %v608, 0.0
    %v833 = vsel %vm385, %v609, 0.0
    %v834 = vsel %vm386, %v610, 0.0
    %v835 = vsel %vm387, %v611, 0.0
    %v836 = vsel %vm388, %v612, 0.0
    %v837 = vsel %vm389, %v613, 0.0
    %v838 = vsel %vm390, %v614, 0.0
    %v839 = vsel %vm391, %v615, 0.0
    %v840 = vsel %vm392, %v616, 0.0
    %v841 = vsel %vm393, %v617, 0.0
    %v842 = vsel %vm394, %v618, 0.0
    %v843 = vsel %vm395, %v619, 0.0
    %v844 = vsel %vm396, %v620, 0.0
    %v845 = vsel %vm397, %v621, 0.0
    %v846 = vsel %vm398, %v622, 0.0
    %v847 = vsel %vm399, %v623, 0.0
    %v848 = vsel %vm400, %v624, 0.0
    %v849 = vsel %vm401, %v625, 0.0
    %v850 = vsel %vm402, %v626, 0.0
    %v851 = vsel %vm403, %v627, 0.0
    %v852 = vsel %vm404, %v628, 0.0
    %v853 = vsel %vm405, %v629, 0.0
    %v854 = vsel %vm406, %v630, 0.0
    %v855 = vsel %vm407, %v631, 0.0
    %v856 = vsel %vm408, %v632, 0.0
    %v857 = vsel %vm409, %v633, 0.0
    %v858 = vsel %vm410, %v634, 0.0
    %v859 = vsel %vm411, %v635, 0.0
    %v860 = vsel %vm412, %v636, 0.0
    %v861 = vsel %vm413, %v637, 0.0
    %v862 = vsel %vm414, %v638, 0.0
    %v863 = vsel %vm415, %v639, 0.0
    %v864 = vsel %vm416, %v640, 0.0
    %v865 = vsel %vm417, %v641, 0.0
    %v866 = vsel %vm418, %v642, 0.0
    %v867 = vsel %vm419, %v643, 0.0
    %v868 = vsel %vm420, %v644, 0.0
    %v869 = vsel %vm421, %v645, 0.0
    %v870 = vsel %vm422, %v646, 0.0
    %v871 = vsel %vm423, %v647, 0.0
    %v872 = vsel %vm424, %v648, 0.0
    %v873 = vsel %vm425, %v649, 0.0
    %v874 = vsel %vm426, %v650, 0.0
    %v875 = vsel %vm427, %v651, 0.0
    %v876 = vsel %vm428, %v652, 0.0
    %v877 = vsel %vm429, %v653, 0.0
    %v878 = vsel %vm430, %v654, 0.0
    %v879 = vsel %vm431, %v655, 0.0
    %v880 = vsel %vm432, %v656, 0.0
    %v881 = vsel %vm433, %v657, 0.0
    %v882 = vsel %vm434, %v658, 0.0
    %v883 = vsel %vm435, %v659, 0.0
    %v884 = vsel %vm436, %v660, 0.0
    %v885 = vsel %vm437, %v661, 0.0
    %v886 = vsel %vm438, %v662, 0.0
    %v887 = vsel %vm439, %v663, 0.0
    %v888 = vsel %vm440, %v664, 0.0
    %v889 = vsel %vm441, %v665, 0.0
    %v890 = vsel %vm442, %v666, 0.0
    %v891 = vsel %vm443, %v667, 0.0
    %v892 = vsel %vm444, %v668, 0.0
    %v893 = vsel %vm445, %v669, 0.0
    %v894 = vsel %vm446, %v670, 0.0
    %v895 = vsel %vm447, %v671, 0.0
    %v896 = vsel %vm448, %v672, 0.0
    %v897 = vsel %vm449, %v673, 0.0
    %v898 = vsel %vm450, %v674, 0.0
    %v899 = vsel %vm451, %v675, 0.0
    %v900 = vsel %vm452, %v676, 0.0
    %v901 = vsel %vm453, %v677, 0.0
    %v902 = vsel %vm454, %v678, 0.0
    %v903 = vsel %vm455, %v679, 0.0
    %v904 = vsel %vm456, %v680, 0.0
    %v905 = vsel %vm457, %v681, 0.0
    %v906 = vsel %vm458, %v682, 0.0
    %v907 = vsel %vm459, %v683, 0.0
    %v908 = vsel %vm460, %v684, 0.0
    %v909 = vsel %vm461, %v685, 0.0
    %v910 = vsel %vm462, %v686, 0.0
    %v911 = vsel %vm463, %v687, 0.0
    %v912 = vsel %vm464, %v688, 0.0
    %v913 = vsel %vm465, %v689, 0.0
    %v914 = vld [vmem:[%s2] sm:$0xff]
    %v915 = vld [vmem:[%s2 + $0x8] sm:$0xff]
    %v916 = vld [vmem:[%s2 + $0x10] sm:$0xff]
    %v917 = vld [vmem:[%s2 + $0x18] sm:$0xff]
    %v918 = vld [vmem:[%s2 + $0x20] sm:$0x1f]
    %v919 = vld [vmem:[%s2 + $0x28] sm:$0x1f]
    %v920 = vld [vmem:[%s3] sm:$0xff]
    %v921 = vld [vmem:[%s3 + $0x8] sm:$0xff]
    %v922 = vld [vmem:[%s3 + $0x10] sm:$0x1f]
    %924 = vset.pattern.permute.xlu0 0
    %925 = vperm.xlu0 %924, %v920
    %v926 = vpop.permute.xlu0 %925
    %929 = vset.pattern.permute.xlu0 0
    %930 = vperm.xlu0 %929, %v921
    %v931 = vpop.permute.xlu0 %930
    %934 = vset.pattern.permute.xlu0 0
    %935 = vperm.xlu0 %934, %v922
    %v936 = vpop.permute.xlu0 %935
    %938 = vmatprep.subr.mxu0 %v691
    %939 = vmatpush1.msra.mxu0 %v690
    %940 = vmatprep.subr.mxu0 %v698
    %941 = vmatpush1.msra.mxu0 %v697
    %942 = vmatprep.subr.mxu0 %v705
    %943 = vmatpush1.msra.mxu0 %v704
    %944 = vmatprep.subr.mxu0 %v712
    %945 = vmatpush1.msra.mxu0 %v711
    %946 = vmatprep.subr.mxu0 %v719
    %947 = vmatpush1.msra.mxu0 %v718
    %948 = vmatprep.subr.mxu0 %v726
    %949 = vmatpush1.msra.mxu0 %v725
    %950 = vmatprep.subr.mxu0 %v733
    %951 = vmatpush1.msra.mxu0 %v732
    %952 = vmatprep.subr.mxu0 %v740
    %953 = vmatpush1.msra.mxu0 %v739
    %954 = vmatprep.subr.mxu0 %v747
    %955 = vmatpush1.msra.mxu0 %v746
    %956 = vmatprep.subr.mxu0 %v754
    %957 = vmatpush1.msra.mxu0 %v753
    %958 = vmatprep.subr.mxu0 %v761
    %959 = vmatpush1.msra.mxu0 %v760
    %960 = vmatprep.subr.mxu0 %v768
    %961 = vmatpush1.msra.mxu0 %v767
    %962 = vmatprep.subr.mxu0 %v775
    %963 = vmatpush1.msra.mxu0 %v774
    %964 = vmatprep.subr.mxu0 %v782
    %965 = vmatpush1.msra.mxu0 %v781
    %966 = vmatprep.subr.mxu0 %v789
    %967 = vmatpush1.msra.mxu0 %v788
    %968 = vmatprep.subr.mxu0 %v796
    %969 = vmatpush1.msra.mxu0 %v795
    %970 = vmatprep.subr.mxu0 %v803
    %971 = vmatpush1.msra.mxu0 %v802
    %972 = vmatprep.subr.mxu0 %v810
    %973 = vmatpush1.msra.mxu0 %v809
    %974 = vmatprep.subr.mxu0 %v817
    %975 = vmatpush1.msra.mxu0 %v816
    %976 = vmatprep.subr.mxu0 %v824
    %977 = vmatpush1.msra.mxu0 %v823
    %978 = vmatprep.subr.mxu0 %v831
    %979 = vmatpush1.msra.mxu0 %v830
    %980 = vmatprep.subr.mxu0 %v838
    %981 = vmatpush1.msra.mxu0 %v837
    %982 = vmatprep.subr.mxu0 %v845
    %983 = vmatpush1.msra.mxu0 %v844
    %984 = vmatprep.subr.mxu0 %v852
    %985 = vmatpush1.msra.mxu0 %v851
    %986 = vmatprep.subr.mxu0 %v859
    %987 = vmatpush1.msra.mxu0 %v858
    %988 = vmatprep.subr.mxu0 %v866
    %989 = vmatpush1.msra.mxu0 %v865
    %990 = vmatprep.subr.mxu0 %v873
    %991 = vmatpush1.msra.mxu0 %v872
    %992 = vmatprep.subr.mxu0 %v880
    %993 = vmatpush1.msra.mxu0 %v879
    %994 = vmatprep.subr.mxu0 %v887
    %995 = vmatpush1.msra.mxu0 %v886
    %996 = vmatprep.subr.mxu0 %v894
    %997 = vmatpush1.msra.mxu0 %v893
    %998 = vmatprep.subr.mxu0 %v901
    %999 = vmatpush1.msra.mxu0 %v900
    %1000 = vmatprep.subr.mxu0 %v908
    %1001 = vmatpush1.msra.mxu0 %v907
    %1002 = vmatprep.mubr.f32.mxu0 %v915
    %1003 = vmatmul.mubr.f32.gmra.mrb[0].mxu0 %v914
    %v1004 = vpop.f32.mrb[0].mxu0
    %v1005 = vadd.f32 %v926, %v1004
    %v1006 = vpop.f32.mrb[0].mxu0
    %v1007 = vadd.f32 %v926, %v1006
    %1008 = vmatprep.mubr.f32.mxu0 %v917
    %1009 = vmatmul.mubr.f32.gmra.mrb[0].mxu0 %v916
    %v1010 = vpop.f32.mrb[0].mxu0
    %v1011 = vadd.f32 %v931, %v1010
    %v1012 = vpop.f32.mrb[0].mxu0
    %v1013 = vadd.f32 %v931, %v1012
    %1014 = vmatprep.mubr.f32.mxu0 %v919
    %1015 = vmatmul.mubr.f32.gmra.mrb[0].mxu0 %v918
    %v1016 = vpop.f32.mrb[0].mxu0
    %v1017 = vadd.f32 %v936, %v1016
    %v1018 = vpop.f32.mrb[0].mxu0
    %v1019 = vadd.f32 %v936, %v1018
    %1020 = vdwg.mxu0
    %1021 = vmatprep.subr.mxu0 %v693
    %1022 = vmatpush1.msra.mxu0 %v692
    %1023 = vmatprep.subr.mxu0 %v700
    %1024 = vmatpush1.msra.mxu0 %v699
    %1025 = vmatprep.subr.mxu0 %v707
    %1026 = vmatpush1.msra.mxu0 %v706
    %1027 = vmatprep.subr.mxu0 %v714
    %1028 = vmatpush1.msra.mxu0 %v713
    %1029 = vmatprep.subr.mxu0 %v721
    %1030 = vmatpush1.msra.mxu0 %v720
    %1031 = vmatprep.subr.mxu0 %v728
    %1032 = vmatpush1.msra.mxu0 %v727
    %1033 = vmatprep.subr.mxu0 %v735
    %1034 = vmatpush1.msra.mxu0 %v734
    %1035 = vmatprep.subr.mxu0 %v742
    %1036 = vmatpush1.msra.mxu0 %v741
    %1037 = vmatprep.subr.mxu0 %v749
    %1038 = vmatpush1.msra.mxu0 %v748
    %1039 = vmatprep.subr.mxu0 %v756
    %1040 = vmatpush1.msra.mxu0 %v755
    %1041 = vmatprep.subr.mxu0 %v763
    %1042 = vmatpush1.msra.mxu0 %v762
    %1043 = vmatprep.subr.mxu0 %v770
    %1044 = vmatpush1.msra.mxu0 %v769
    %1045 = vmatprep.subr.mxu0 %v777
    %1046 = vmatpush1.msra.mxu0 %v776
    %1047 = vmatprep.subr.mxu0 %v784
    %1048 = vmatpush1.msra.mxu0 %v783
    %1049 = vmatprep.subr.mxu0 %v791
    %1050 = vmatpush1.msra.mxu0 %v790
    %1051 = vmatprep.subr.mxu0 %v798
    %1052 = vmatpush1.msra.mxu0 %v797
    %1053 = vmatprep.subr.mxu0 %v805
    %1054 = vmatpush1.msra.mxu0 %v804
    %1055 = vmatprep.subr.mxu0 %v812
    %1056 = vmatpush1.msra.mxu0 %v811
    %1057 = vmatprep.subr.mxu0 %v819
    %1058 = vmatpush1.msra.mxu0 %v818
    %1059 = vmatprep.subr.mxu0 %v826
    %1060 = vmatpush1.msra.mxu0 %v825
    %1061 = vmatprep.subr.mxu0 %v833
    %1062 = vmatpush1.msra.mxu0 %v832
    %1063 = vmatprep.subr.mxu0 %v840
    %1064 = vmatpush1.msra.mxu0 %v839
    %1065 = vmatprep.subr.mxu0 %v847
    %1066 = vmatpush1.msra.mxu0 %v846
    %1067 = vmatprep.subr.mxu0 %v854
    %1068 = vmatpush1.msra.mxu0 %v853
    %1069 = vmatprep.subr.mxu0 %v861
    %1070 = vmatpush1.msra.mxu0 %v860
    %1071 = vmatprep.subr.mxu0 %v868
    %1072 = vmatpush1.msra.mxu0 %v867
    %1073 = vmatprep.subr.mxu0 %v875
    %1074 = vmatpush1.msra.mxu0 %v874
    %1075 = vmatprep.subr.mxu0 %v882
    %1076 = vmatpush1.msra.mxu0 %v881
    %1077 = vmatprep.subr.mxu0 %v889
    %1078 = vmatpush1.msra.mxu0 %v888
    %1079 = vmatprep.subr.mxu0 %v896
    %1080 = vmatpush1.msra.mxu0 %v895
    %1081 = vmatprep.subr.mxu0 %v903
    %1082 = vmatpush1.msra.mxu0 %v902
    %1083 = vmatprep.subr.mxu0 %v910
    %1084 = vmatpush1.msra.mxu0 %v909
    %1085 = vmatprep.mubr.f32.mxu0 %v915
    %1086 = vmatmul.mubr.f32.gmra.mrb[0].mxu0 %v914
    %v1087 = vpop.f32.mrb[0].mxu0
    %v1088 = vadd.f32 %v926, %v1087
    %v1089 = vpop.f32.mrb[0].mxu0
    %v1090 = vadd.f32 %v926, %v1089
    %1091 = vmatprep.mubr.f32.mxu0 %v917
    %1092 = vmatmul.mubr.f32.gmra.mrb[0].mxu0 %v916
    %v1093 = vpop.f32.mrb[0].mxu0
    %v1094 = vadd.f32 %v931, %v1093
    %v1095 = vpop.f32.mrb[0].mxu0
    %v1096 = vadd.f32 %v931, %v1095
    %1097 = vmatprep.mubr.f32.mxu0 %v919
    %1098 = vmatmul.mubr.f32.gmra.mrb[0].mxu0 %v918
    %v1099 = vpop.f32.mrb[0].mxu0
    %v1100 = vadd.f32 %v936, %v1099
    %v1101 = vpop.f32.mrb[0].mxu0
    %v1102 = vadd.f32 %v936, %v1101
    %1103 = vdwg.mxu0
    %1104 = vmatprep.subr.mxu0 %v695
    %1105 = vmatpush1.msra.mxu0 %v694
    %1106 = vmatprep.subr.mxu0 %v702
    %1107 = vmatpush1.msra.mxu0 %v701
    %1108 = vmatprep.subr.mxu0 %v709
    %1109 = vmatpush1.msra.mxu0 %v708
    %1110 = vmatprep.subr.mxu0 %v716
    %1111 = vmatpush1.msra.mxu0 %v715
    %1112 = vmatprep.subr.mxu0 %v723
    %1113 = vmatpush1.msra.mxu0 %v722
    %1114 = vmatprep.subr.mxu0 %v730
    %1115 = vmatpush1.msra.mxu0 %v729
    %1116 = vmatprep.subr.mxu0 %v737
    %1117 = vmatpush1.msra.mxu0 %v736
    %1118 = vmatprep.subr.mxu0 %v744
    %1119 = vmatpush1.msra.mxu0 %v743
    %1120 = vmatprep.subr.mxu0 %v751
    %1121 = vmatpush1.msra.mxu0 %v750
    %1122 = vmatprep.subr.mxu0 %v758
    %1123 = vmatpush1.msra.mxu0 %v757
    %1124 = vmatprep.subr.mxu0 %v765
    %1125 = vmatpush1.msra.mxu0 %v764
    %1126 = vmatprep.subr.mxu0 %v772
    %1127 = vmatpush1.msra.mxu0 %v771
    %1128 = vmatprep.subr.mxu0 %v779
    %1129 = vmatpush1.msra.mxu0 %v778
    %1130 = vmatprep.subr.mxu0 %v786
    %1131 = vmatpush1.msra.mxu0 %v785
    %1132 = vmatprep.subr.mxu0 %v793
    %1133 = vmatpush1.msra.mxu0 %v792
    %1134 = vmatprep.subr.mxu0 %v800
    %1135 = vmatpush1.msra.mxu0 %v799
    %1136 = vmatprep.subr.mxu0 %v807
    %1137 = vmatpush1.msra.mxu0 %v806
    %1138 = vmatprep.subr.mxu0 %v814
    %1139 = vmatpush1.msra.mxu0 %v813
    %1140 = vmatprep.subr.mxu0 %v821
    %1141 = vmatpush1.msra.mxu0 %v820
    %1142 = vmatprep.subr.mxu0 %v828
    %1143 = vmatpush1.msra.mxu0 %v827
    %1144 = vmatprep.subr.mxu0 %v835
    %1145 = vmatpush1.msra.mxu0 %v834
    %1146 = vmatprep.subr.mxu0 %v842
    %1147 = vmatpush1.msra.mxu0 %v841
    %1148 = vmatprep.subr.mxu0 %v849
    %1149 = vmatpush1.msra.mxu0 %v848
    %1150 = vmatprep.subr.mxu0 %v856
    %1151 = vmatpush1.msra.mxu0 %v855
    %1152 = vmatprep.subr.mxu0 %v863
    %1153 = vmatpush1.msra.mxu0 %v862
    %1154 = vmatprep.subr.mxu0 %v870
    %1155 = vmatpush1.msra.mxu0 %v869
    %1156 = vmatprep.subr.mxu0 %v877
    %1157 = vmatpush1.msra.mxu0 %v876
    %1158 = vmatprep.subr.mxu0 %v884
    %1159 = vmatpush1.msra.mxu0 %v883
    %1160 = vmatprep.subr.mxu0 %v891
    %1161 = vmatpush1.msra.mxu0 %v890
    %1162 = vmatprep.subr.mxu0 %v898
    %1163 = vmatpush1.msra.mxu0 %v897
    %1164 = vmatprep.subr.mxu0 %v905
    %1165 = vmatpush1.msra.mxu0 %v904
    %1166 = vmatprep.subr.mxu0 %v912
    %1167 = vmatpush1.msra.mxu0 %v911
    %1168 = vmatprep.mubr.f32.mxu0 %v915
    %1169 = vmatmul.mubr.f32.gmra.mrb[0].mxu0 %v914
    %v1170 = vpop.f32.mrb[0].mxu0
    %v1171 = vadd.f32 %v926, %v1170
    %v1172 = vpop.f32.mrb[0].mxu0
    %v1173 = vadd.f32 %v926, %v1172
    %1174 = vmatprep.mubr.f32.mxu0 %v917
    %1175 = vmatmul.mubr.f32.gmra.mrb[0].mxu0 %v916
    %v1176 = vpop.f32.mrb[0].mxu0
    %v1177 = vadd.f32 %v931, %v1176
    %v1178 = vpop.f32.mrb[0].mxu0
    %v1179 = vadd.f32 %v931, %v1178
    %1180 = vmatprep.mubr.f32.mxu0 %v919
    %1181 = vmatmul.mubr.f32.gmra.mrb[0].mxu0 %v918
    %v1182 = vpop.f32.mrb[0].mxu0
    %v1183 = vadd.f32 %v936, %v1182
    %v1184 = vpop.f32.mrb[0].mxu0
    %v1185 = vadd.f32 %v936, %v1184
    %1186 = vdwg.mxu0
    %1187 = vmatprep.subr.mxu0 0.0
    %1188 = vmatpush1.msra.mxu0 %v696
    %1189 = vmatprep.subr.mxu0 0.0
    %1190 = vmatpush1.msra.mxu0 %v703
    %1191 = vmatprep.subr.mxu0 0.0
    %1192 = vmatpush1.msra.mxu0 %v710
    %1193 = vmatprep.subr.mxu0 0.0
    %1194 = vmatpush1.msra.mxu0 %v717
    %1195 = vmatprep.subr.mxu0 0.0
    %1196 = vmatpush1.msra.mxu0 %v724
    %1197 = vmatprep.subr.mxu0 0.0
    %1198 = vmatpush1.msra.mxu0 %v731
    %1199 = vmatprep.subr.mxu0 0.0
    %1200 = vmatpush1.msra.mxu0 %v738
    %1201 = vmatprep.subr.mxu0 0.0
    %1202 = vmatpush1.msra.mxu0 %v745
    %1203 = vmatprep.subr.mxu0 0.0
    %1204 = vmatpush1.msra.mxu0 %v752
    %1205 = vmatprep.subr.mxu0 0.0
    %1206 = vmatpush1.msra.mxu0 %v759
    %1207 = vmatprep.subr.mxu0 0.0
    %1208 = vmatpush1.msra.mxu0 %v766
    %1209 = vmatprep.subr.mxu0 0.0
    %1210 = vmatpush1.msra.mxu0 %v773
    %1211 = vmatprep.subr.mxu0 0.0
    %1212 = vmatpush1.msra.mxu0 %v780
    %1213 = vmatprep.subr.mxu0 0.0
    %1214 = vmatpush1.msra.mxu0 %v787
    %1215 = vmatprep.subr.mxu0 0.0
    %1216 = vmatpush1.msra.mxu0 %v794
    %1217 = vmatprep.subr.mxu0 0.0
    %1218 = vmatpush1.msra.mxu0 %v801
    %1219 = vmatprep.subr.mxu0 0.0
    %1220 = vmatpush1.msra.mxu0 %v808
    %1221 = vmatprep.subr.mxu0 0.0
    %1222 = vmatpush1.msra.mxu0 %v815
    %1223 = vmatprep.subr.mxu0 0.0
    %1224 = vmatpush1.msra.mxu0 %v822
    %1225 = vmatprep.subr.mxu0 0.0
    %1226 = vmatpush1.msra.mxu0 %v829
    %1227 = vmatprep.subr.mxu0 0.0
    %1228 = vmatpush1.msra.mxu0 %v836
    %1229 = vmatprep.subr.mxu0 0.0
    %1230 = vmatpush1.msra.mxu0 %v843
    %1231 = vmatprep.subr.mxu0 0.0
    %1232 = vmatpush1.msra.mxu0 %v850
    %1233 = vmatprep.subr.mxu0 0.0
    %1234 = vmatpush1.msra.mxu0 %v857
    %1235 = vmatprep.subr.mxu0 0.0
    %1236 = vmatpush1.msra.mxu0 %v864
    %1237 = vmatprep.subr.mxu0 0.0
    %1238 = vmatpush1.msra.mxu0 %v871
    %1239 = vmatprep.subr.mxu0 0.0
    %1240 = vmatpush1.msra.mxu0 %v878
    %1241 = vmatprep.subr.mxu0 0.0
    %1242 = vmatpush1.msra.mxu0 %v885
    %1243 = vmatprep.subr.mxu0 0.0
    %1244 = vmatpush1.msra.mxu0 %v892
    %1245 = vmatprep.subr.mxu0 0.0
    %1246 = vmatpush1.msra.mxu0 %v899
    %1247 = vmatprep.subr.mxu0 0.0
    %1248 = vmatpush1.msra.mxu0 %v906
    %1249 = vmatprep.subr.mxu0 0.0
    %1250 = vmatpush1.msra.mxu0 %v913
    %1251 = vmatprep.mubr.f32.mxu0 %v915
    %1252 = vmatmul.mubr.f32.gmra.mrb[0].mxu0 %v914
    %v1253 = vpop.f32.mrb[0].mxu0
    %v1254 = vadd.f32 %v926, %v1253
    %v1255 = vpop.f32.mrb[0].mxu0
    %1256 = vmatprep.mubr.f32.mxu0 %v917
    %1257 = vmatmul.mubr.f32.gmra.mrb[0].mxu0 %v916
    %v1258 = vpop.f32.mrb[0].mxu0
    %v1259 = vadd.f32 %v931, %v1258
    %v1260 = vpop.f32.mrb[0].mxu0
    %1261 = vmatprep.mubr.f32.mxu0 %v919
    %1262 = vmatmul.mubr.f32.gmra.mrb[0].mxu0 %v918
    %v1263 = vpop.f32.mrb[0].mxu0
    %v1264 = vadd.f32 %v936, %v1263
    %v1265 = vpop.f32.mrb[0].mxu0
    %1266 = vdwg.mxu0
    %1267 = vst [vmem:[#allocation2] sm:$0xff] %v1005
    %1268 = vst [vmem:[#allocation2 + $0x8] sm:$0xff] %v1007
    %1269 = vst [vmem:[#allocation2 + $0x10] sm:$0xff] %v1088
    %1270 = vst [vmem:[#allocation2 + $0x18] sm:$0xff] %v1090
    %1271 = vst [vmem:[#allocation2 + $0x20] sm:$0xff] %v1171
    %1272 = vst [vmem:[#allocation2 + $0x28] sm:$0xff] %v1173
    %vm1273 = vcmask 130048
    %1274 = vst.msk [vmem:[#allocation2 + $0x30] sm:$0xff] %vm1273, %v1254
    %1275 = vst [vmem:[#allocation2 + $0x38] sm:$0xff] %v1011
    %1276 = vst [vmem:[#allocation2 + $0x40] sm:$0xff] %v1013
    %1277 = vst [vmem:[#allocation2 + $0x48] sm:$0xff] %v1094
    %1278 = vst [vmem:[#allocation2 + $0x50] sm:$0xff] %v1096
    %1279 = vst [vmem:[#allocation2 + $0x58] sm:$0xff] %v1177
    %1280 = vst [vmem:[#allocation2 + $0x60] sm:$0xff] %v1179
    %1281 = vst.msk [vmem:[#allocation2 + $0x68] sm:$0xff] %vm1273, %v1259
    %1282 = vst [vmem:[#allocation2 + $0x70] sm:$0x1f] %v1017
    %1283 = vst [vmem:[#allocation2 + $0x78] sm:$0x1f] %v1019
    %1284 = vst [vmem:[#allocation2 + $0x80] sm:$0x1f] %v1100
    %1285 = vst [vmem:[#allocation2 + $0x88] sm:$0x1f] %v1102
    %1286 = vst [vmem:[#allocation2 + $0x90] sm:$0x1f] %v1183
    %1287 = vst [vmem:[#allocation2 + $0x98] sm:$0x1f] %v1185
    %vm1288 = vcmask 126976
    %1289 = vst.msk [vmem:[#allocation2 + $0xa0] sm:$0x1f] %vm1288, %v1264
    // Predicated region
    $region18: #{tpu_custom_call.1} parent=1 // pred_check
      _
    $region19: #{tpu_custom_call.1} parent=1 // pred_check_branch
      %1291 = sbr.rel (0) target = $region21
    $region20: #{tpu_custom_call.1} parent=1 // pred_region
      %s1293 = ssub.s32 2688, 2688
      %1294 = vsyncadd [#allocation3], %s1293
      %s1295 = sshll.u32 [#allocation2], 4
      %s1296 = int_to_ptr.vmem [resolvable:$true] %s1295
      %1301 = dma.vmem_to_hbm [thread:$0]  %s1296, 2688, %s4, [#allocation3], 896, 896, 56
    $region21: #{tpu_custom_call.1} parent=1 // pred_fallthru
      _
    // Predicated region
    $region22: #{tpu_custom_call.1} parent=1 // pred_check
      _
    $region23: #{tpu_custom_call.1} parent=1 // pred_check_branch
      %1303 = sbr.rel (0) target = $region25
    $region24: #{tpu_custom_call.1} parent=1 // pred_region
      %1304 = dma.done [#allocation3], 2688
    $region25: #{tpu_custom_call.1} parent=1 // pred_fallthru
      _
    %1305 = vsyncpa [#allocation3], 1

</llo_original>
